<compile_context>
chip_gen: v6e
topology: v6e:2x2x1
jax: 0.10.0
libtpu: 0.0.40
codegen_flags: <defaults>
</compile_context>

<pallas_src>
import functools

import jax
import jax.numpy as jnp
from jax import lax
from jax.experimental import pallas as pl
from jax.experimental.pallas import tpu as pltpu


def _elu(x):
    return jnp.where(x > 0, x, jnp.exp(x) - 1.0)


def _gat_forward_kernel(feat_ref, adj_t_ref,
                        w0_ref, al0_ref, ar0_ref, b0_ref,
                        w1_ref, al1_ref, ar1_ref, b1_ref,
                        wp_ref, bp_ref,
                        logits_ref, emb_ref,
                        *, heads0, f0, heads1, f1, n_nodes, readout):
    """Fused GAT forward for a single (small) graph, everything resident in VMEM.

    feat_ref  : (N, Cin)    input node features
    adj_t_ref : (N, N)      adj_t[v, u] = 1.0 iff edge u -> v (dest-major, binary)
    w*_ref    : (Cin, H*F)  GATConv fc weights (head-major)
    al*/ar*   : (H, F)      attn_l (source) / attn_r (dest)
    b*_ref    : (1, H*F)    GATConv bias
    wp/bp     : (D, n_vars) / (1, n_vars)  predict head
    logits_ref: (1, n_vars)
    emb_ref   : (N, H1*F1)  final node embeddings (g.ndata['embedding'])
    """
    adj_t = adj_t_ref[...]
    # Hoisted once, reused by both layers and all heads.
    neg_bias = jnp.where(adj_t > 0.0, 0.0, -1e30)

    def gat_conv(h, w_ref, al_ref, ar_ref, b_ref, num_heads, out_feats):
        # Wh = h @ W for all heads at once (single MXU matmul).
        wh = jnp.dot(h, w_ref[...], preferred_element_type=jnp.float32)
        bias = b_ref[...]
        outs = []
        for hd in range(num_heads):
            lo = hd * out_feats
            wh_h = wh[:, lo:lo + out_feats]                    # (N, F)
            al = al_ref[hd:hd + 1, :]                          # (1, F) source attn
            ar = ar_ref[hd:hd + 1, :]                          # (1, F) dest attn

            # er[v] along sublanes (VPU multiply + lane reduce);
            # el[u] along lanes (so e is built dest-major with no transpose).
            er = jnp.sum(wh_h * ar, axis=1, keepdims=True)     # (N, 1)
            el_row = lax.dot_general(                          # (1, N)
                al, wh_h, (((1,), (1,)), ((), ())),
                preferred_element_type=jnp.float32)

            # e[v, u] = LeakyReLU(el[u] + er[v], 0.2); -1e30 on non-edges.
            e = er + el_row                                    # (N, N)
            e = jnp.where(e > 0, e, 0.2 * e)
            e = e + neg_bias

            # Softmax over incoming edges of each dest node v = lane reduction.
            m = jnp.max(e, axis=-1, keepdims=True)             # (N, 1)
            p = jnp.exp(e - m) * adj_t                         # exact 0 off-edges
            s = jnp.sum(p, axis=-1, keepdims=True)             # (N, 1)
            # With self-loops every row has >=1 edge; if a row had none,
            # p == 0 everywhere so alpha == 0 and out = activation(bias),
            # matching DGL with allow_zero_in_degree=True.
            alpha = p * pl.reciprocal(jnp.maximum(s, 1e-9), approx=True)

            # out[v] = sum_u alpha[v, u] * Wh[u] -> standard (N,N)@(N,F) matmul.
            out_h = jnp.dot(alpha, wh_h, preferred_element_type=jnp.float32)
            outs.append(_elu(out_h + bias[:, lo:lo + out_feats]))
        return outs[0] if num_heads == 1 else jnp.concatenate(outs, axis=1)

    # Layer 0: GATConv(in_channels, hidden_channels, heads=1)
    h0 = gat_conv(feat_ref[...], w0_ref, al0_ref, ar0_ref, b0_ref, heads0, f0)
    # TODO(synk): additional_feature concat path (i==0 branch) skipped; config has additional_feature=0.

    # Layer 1: GATConv(hidden_channels, out_channels, heads=heads)
    emb = gat_conv(h0, w1_ref, al1_ref, ar1_ref, b1_ref, heads1, f1)
    emb_ref[...] = emb

    # Graph readout (single graph) + predict linear head.
    if readout == "mean":
        pooled = jnp.sum(emb, axis=0, keepdims=True) * (1.0 / n_nodes)
    else:  # "max"
        pooled = jnp.max(emb, axis=0, keepdims=True)
    logits_ref[...] = (jnp.dot(pooled, wp_ref[...],
                               preferred_element_type=jnp.float32) + bp_ref[...])


@functools.partial(jax.jit, static_argnames=("readout",))
def gat_forward(features, adj, params, *, readout="mean"):
    """adj[u, v] = 1.0 iff edge u -> v (binary). Returns (logits, node embeddings)."""
    n = features.shape[0]
    heads0, f0 = params["al0"].shape
    heads1, f1 = params["al1"].shape
    n_vars = params["wp"].shape[1]

    adj_t = adj.T  # wrapper-side layout plumbing: dest-major adjacency

    kern = functools.partial(_gat_forward_kernel,
                             heads0=heads0, f0=f0, heads1=heads1, f1=f1,
                             n_nodes=n, readout=readout)
    vmem = pl.BlockSpec(memory_space=pltpu.MemorySpace.VMEM)
    logits, emb = pl.pallas_call(
        kern,
        out_shape=(jax.ShapeDtypeStruct((1, n_vars), jnp.float32),
                   jax.ShapeDtypeStruct((n, heads1 * f1), jnp.float32)),
        in_specs=[vmem] * 12,
        out_specs=(vmem, vmem),
    )(features, adj_t,
      params["w0"], params["al0"], params["ar0"], params["b0"],
      params["w1"], params["al1"], params["ar1"], params["b1"],
      params["wp"], params["bp"])
    return logits, emb


if __name__ == "__main__":
    # net_params: in_channels=4, hidden_channels=8, out_channels=8, heads=2,
    # num_layers=2, n_vars=3, readout='mean', additional_feature=0, act='elu'
    N = 16
    IN_C, HID_C, OUT_C, HEADS, N_VARS = 4, 8, 8, 2, 3

    key = jax.random.PRNGKey(0)
    ks = jax.random.split(key, 12)

    # Dense binary adjacency (edge u -> v), with self loops so every node has
    # at least one incoming edge.
    adj = (jax.random.uniform(ks[0], (N, N)) < 0.3).astype(jnp.float32)
    adj = jnp.maximum(adj, jnp.eye(N, dtype=jnp.float32))

    features = jax.random.normal(ks[1], (N, IN_C), dtype=jnp.float32)

    params = {
        # layer 0: heads=1, out = hidden_channels - additional_feature = 8
        "w0": 0.3 * jax.random.normal(ks[2], (IN_C, 1 * HID_C), jnp.float32),
        "al0": 0.3 * jax.random.normal(ks[3], (1, HID_C), jnp.float32),
        "ar0": 0.3 * jax.random.normal(ks[4], (1, HID_C), jnp.float32),
        "b0": 0.1 * jax.random.normal(ks[5], (1, 1 * HID_C), jnp.float32),
        # layer 1: heads=2, out = out_channels = 8
        "w1": 0.3 * jax.random.normal(ks[6], (HID_C, HEADS * OUT_C), jnp.float32),
        "al1": 0.3 * jax.random.normal(ks[7], (HEADS, OUT_C), jnp.float32),
        "ar1": 0.3 * jax.random.normal(ks[8], (HEADS, OUT_C), jnp.float32),
        "b1": 0.1 * jax.random.normal(ks[9], (1, HEADS * OUT_C), jnp.float32),
        # predict: Linear(out_channels * heads -> n_vars)
        "wp": 0.3 * jax.random.normal(ks[10], (HEADS * OUT_C, N_VARS), jnp.float32),
        "bp": 0.1 * jax.random.normal(ks[11], (1, N_VARS), jnp.float32),
    }

    logits, emb = gat_forward(features, adj, params, readout="mean")
    jax.block_until_ready((logits, emb))
    assert logits.shape == (1, N_VARS) and emb.shape == (N, HEADS * OUT_C)
    assert bool(jnp.all(jnp.isfinite(logits))) and bool(jnp.all(jnp.isfinite(emb)))
    print("KERNEL_OK")
</pallas_src>

<mosaic_0001>
module attributes {stable_mosaic.version = 11 : i64} {
  func.func @_gat_forward_kernel(%arg0: memref<16x4xf32, #tpu.memory_space<vmem>>, %arg1: memref<16x16xf32, #tpu.memory_space<vmem>>, %arg2: memref<4x8xf32, #tpu.memory_space<vmem>>, %arg3: memref<1x8xf32, #tpu.memory_space<vmem>>, %arg4: memref<1x8xf32, #tpu.memory_space<vmem>>, %arg5: memref<1x8xf32, #tpu.memory_space<vmem>>, %arg6: memref<8x16xf32, #tpu.memory_space<vmem>>, %arg7: memref<2x8xf32, #tpu.memory_space<vmem>>, %arg8: memref<2x8xf32, #tpu.memory_space<vmem>>, %arg9: memref<1x16xf32, #tpu.memory_space<vmem>>, %arg10: memref<16x3xf32, #tpu.memory_space<vmem>>, %arg11: memref<1x3xf32, #tpu.memory_space<vmem>>, %arg12: memref<1x3xf32, #tpu.memory_space<vmem>>, %arg13: memref<16x16xf32, #tpu.memory_space<vmem>>) attributes {dimension_semantics = [], scalar_prefetch = 0 : i64, scratch_operands = 0 : i64, tpu.core_type = #tpu.core_type<tc>} {
    %c0 = arith.constant 0 : index
    %c0_0 = arith.constant 0 : index
    %0 = vector.load %arg1[%c0, %c0_0] : memref<16x16xf32, #tpu.memory_space<vmem>>, vector<16x16xf32>
    %cst = arith.constant 0.000000e+00 : f32
    %1 = vector.broadcast %cst : f32 to vector<16x16xf32>
    %2 = arith.cmpf ogt, %0, %1 : vector<16x16xf32>
    %cst_1 = arith.constant 0.000000e+00 : f32
    %cst_2 = arith.constant -1.000000e+30 : f32
    %3 = vector.broadcast %cst_1 : f32 to vector<16x16xf32>
    %4 = vector.broadcast %cst_2 : f32 to vector<16x16xf32>
    %5 = arith.select %2, %3, %4 : vector<16x16xi1>, vector<16x16xf32>
    %c0_3 = arith.constant 0 : index
    %c0_4 = arith.constant 0 : index
    %6 = vector.load %arg0[%c0_3, %c0_4] : memref<16x4xf32, #tpu.memory_space<vmem>>, vector<16x4xf32>
    %c0_5 = arith.constant 0 : index
    %c0_6 = arith.constant 0 : index
    %7 = vector.load %arg2[%c0_5, %c0_6] : memref<4x8xf32, #tpu.memory_space<vmem>>, vector<4x8xf32>
    %cst_7 = arith.constant dense<0.000000e+00> : vector<16x8xf32>
    %8 = tpu.matmul %6, %7, %cst_7 {dimension_numbers = #tpu.dot_dimension_numbers<[1], [0], [0], [1], [0, 0, 1, 1], [], []>} : vector<16x4xf32>, vector<4x8xf32>, vector<16x8xf32> -> vector<16x8xf32>
    %c0_8 = arith.constant 0 : index
    %c0_9 = arith.constant 0 : index
    %9 = vector.load %arg5[%c0_8, %c0_9] : memref<1x8xf32, #tpu.memory_space<vmem>>, vector<1x8xf32>
    %c0_10 = arith.constant 0 : index
    %c0_11 = arith.constant 0 : index
    %10 = vector.load %arg3[%c0_10, %c0_11] : memref<1x8xf32, #tpu.memory_space<vmem>>, vector<1x8xf32>
    %c0_12 = arith.constant 0 : index
    %c0_13 = arith.constant 0 : index
    %11 = vector.load %arg4[%c0_12, %c0_13] : memref<1x8xf32, #tpu.memory_space<vmem>>, vector<1x8xf32>
    %12 = vector.broadcast %11 : vector<1x8xf32> to vector<16x8xf32>
    %13 = arith.mulf %8, %12 : vector<16x8xf32>
    %cst_14 = arith.constant dense<0.000000e+00> : vector<16xf32>
    %14 = vector.multi_reduction <add>, %13, %cst_14 [1] : vector<16x8xf32> to vector<16xf32>
    %15 = vector.shape_cast %14 : vector<16xf32> to vector<16x1xf32>
    %cst_15 = arith.constant dense<0.000000e+00> : vector<1x16xf32>
    %16 = tpu.matmul %10, %8, %cst_15 {dimension_numbers = #tpu.dot_dimension_numbers<[1], [1], [0], [0], [0, 0, 1, 0], [], []>} : vector<1x8xf32>, vector<16x8xf32>, vector<1x16xf32> -> vector<1x16xf32>
    %17 = vector.broadcast %15 : vector<16x1xf32> to vector<16x16xf32>
    %18 = vector.broadcast %16 : vector<1x16xf32> to vector<16x16xf32>
    %19 = arith.addf %17, %18 : vector<16x16xf32>
    %cst_16 = arith.constant 0.000000e+00 : f32
    %20 = vector.broadcast %cst_16 : f32 to vector<16x16xf32>
    %21 = arith.cmpf ogt, %19, %20 : vector<16x16xf32>
    %cst_17 = arith.constant 2.000000e-01 : f32
    %22 = vector.broadcast %cst_17 : f32 to vector<16x16xf32>
    %23 = arith.mulf %22, %19 : vector<16x16xf32>
    %24 = arith.select %21, %19, %23 : vector<16x16xi1>, vector<16x16xf32>
    %25 = arith.addf %24, %5 : vector<16x16xf32>
    %cst_18 = arith.constant dense<0xFF800000> : vector<16xf32>
    %26 = vector.multi_reduction <maximumf>, %25, %cst_18 [1] : vector<16x16xf32> to vector<16xf32>
    %27 = vector.shape_cast %26 : vector<16xf32> to vector<16x1xf32>
    %28 = vector.broadcast %27 : vector<16x1xf32> to vector<16x16xf32>
    %29 = arith.subf %25, %28 : vector<16x16xf32>
    %30 = math.exp %29 : vector<16x16xf32>
    %31 = arith.mulf %30, %0 : vector<16x16xf32>
    %cst_19 = arith.constant dense<0.000000e+00> : vector<16xf32>
    %32 = vector.multi_reduction <add>, %31, %cst_19 [1] : vector<16x16xf32> to vector<16xf32>
    %33 = vector.shape_cast %32 : vector<16xf32> to vector<16x1xf32>
    %cst_20 = arith.constant 9.99999971E-10 : f32
    %34 = vector.broadcast %cst_20 : f32 to vector<16x1xf32>
    %35 = arith.maximumf %33, %34 : vector<16x1xf32>
    %36 = tpu.reciprocal %35 {approx = true} : vector<16x1xf32> -> vector<16x1xf32>
    %37 = vector.broadcast %36 : vector<16x1xf32> to vector<16x16xf32>
    %38 = arith.mulf %31, %37 : vector<16x16xf32>
    %cst_21 = arith.constant dense<0.000000e+00> : vector<16x8xf32>
    %39 = tpu.matmul %38, %8, %cst_21 {dimension_numbers = #tpu.dot_dimension_numbers<[1], [0], [0], [1], [0, 0, 1, 1], [], []>} : vector<16x16xf32>, vector<16x8xf32>, vector<16x8xf32> -> vector<16x8xf32>
    %40 = vector.broadcast %9 : vector<1x8xf32> to vector<16x8xf32>
    %41 = arith.addf %39, %40 : vector<16x8xf32>
    %cst_22 = arith.constant 0.000000e+00 : f32
    %42 = vector.broadcast %cst_22 : f32 to vector<16x8xf32>
    %43 = arith.cmpf ogt, %41, %42 : vector<16x8xf32>
    %44 = math.exp %41 : vector<16x8xf32>
    %cst_23 = arith.constant 1.000000e+00 : f32
    %45 = vector.broadcast %cst_23 : f32 to vector<16x8xf32>
    %46 = arith.subf %44, %45 : vector<16x8xf32>
    %47 = arith.select %43, %41, %46 : vector<16x8xi1>, vector<16x8xf32>
    %c0_24 = arith.constant 0 : index
    %c0_25 = arith.constant 0 : index
    %48 = vector.load %arg6[%c0_24, %c0_25] : memref<8x16xf32, #tpu.memory_space<vmem>>, vector<8x16xf32>
    %cst_26 = arith.constant dense<0.000000e+00> : vector<16x16xf32>
    %49 = tpu.matmul %47, %48, %cst_26 {dimension_numbers = #tpu.dot_dimension_numbers<[1], [0], [0], [1], [0, 0, 1, 1], [], []>} : vector<16x8xf32>, vector<8x16xf32>, vector<16x16xf32> -> vector<16x16xf32>
    %c0_27 = arith.constant 0 : index
    %c0_28 = arith.constant 0 : index
    %50 = vector.load %arg9[%c0_27, %c0_28] : memref<1x16xf32, #tpu.memory_space<vmem>>, vector<1x16xf32>
    %51 = vector.extract_strided_slice %49 {offsets = [0, 0], sizes = [16, 8], strides = [1, 1]} : vector<16x16xf32> to vector<16x8xf32>
    %c0_29 = arith.constant 0 : index
    %c0_30 = arith.constant 0 : index
    %52 = vector.load %arg7[%c0_29, %c0_30] : memref<2x8xf32, #tpu.memory_space<vmem>>, vector<1x8xf32>
    %c0_31 = arith.constant 0 : index
    %c0_32 = arith.constant 0 : index
    %53 = vector.load %arg8[%c0_31, %c0_32] : memref<2x8xf32, #tpu.memory_space<vmem>>, vector<1x8xf32>
    %54 = vector.broadcast %53 : vector<1x8xf32> to vector<16x8xf32>
    %55 = arith.mulf %51, %54 : vector<16x8xf32>
    %cst_33 = arith.constant dense<0.000000e+00> : vector<16xf32>
    %56 = vector.multi_reduction <add>, %55, %cst_33 [1] : vector<16x8xf32> to vector<16xf32>
    %57 = vector.shape_cast %56 : vector<16xf32> to vector<16x1xf32>
    %cst_34 = arith.constant dense<0.000000e+00> : vector<1x16xf32>
    %58 = tpu.matmul %52, %51, %cst_34 {dimension_numbers = #tpu.dot_dimension_numbers<[1], [1], [0], [0], [0, 0, 1, 0], [], []>} : vector<1x8xf32>, vector<16x8xf32>, vector<1x16xf32> -> vector<1x16xf32>
    %59 = vector.broadcast %57 : vector<16x1xf32> to vector<16x16xf32>
    %60 = vector.broadcast %58 : vector<1x16xf32> to vector<16x16xf32>
    %61 = arith.addf %59, %60 : vector<16x16xf32>
    %cst_35 = arith.constant 0.000000e+00 : f32
    %62 = vector.broadcast %cst_35 : f32 to vector<16x16xf32>
    %63 = arith.cmpf ogt, %61, %62 : vector<16x16xf32>
    %cst_36 = arith.constant 2.000000e-01 : f32
    %64 = vector.broadcast %cst_36 : f32 to vector<16x16xf32>
    %65 = arith.mulf %64, %61 : vector<16x16xf32>
    %66 = arith.select %63, %61, %65 : vector<16x16xi1>, vector<16x16xf32>
    %67 = arith.addf %66, %5 : vector<16x16xf32>
    %cst_37 = arith.constant dense<0xFF800000> : vector<16xf32>
    %68 = vector.multi_reduction <maximumf>, %67, %cst_37 [1] : vector<16x16xf32> to vector<16xf32>
    %69 = vector.shape_cast %68 : vector<16xf32> to vector<16x1xf32>
    %70 = vector.broadcast %69 : vector<16x1xf32> to vector<16x16xf32>
    %71 = arith.subf %67, %70 : vector<16x16xf32>
    %72 = math.exp %71 : vector<16x16xf32>
    %73 = arith.mulf %72, %0 : vector<16x16xf32>
    %cst_38 = arith.constant dense<0.000000e+00> : vector<16xf32>
    %74 = vector.multi_reduction <add>, %73, %cst_38 [1] : vector<16x16xf32> to vector<16xf32>
    %75 = vector.shape_cast %74 : vector<16xf32> to vector<16x1xf32>
    %cst_39 = arith.constant 9.99999971E-10 : f32
    %76 = vector.broadcast %cst_39 : f32 to vector<16x1xf32>
    %77 = arith.maximumf %75, %76 : vector<16x1xf32>
    %78 = tpu.reciprocal %77 {approx = true} : vector<16x1xf32> -> vector<16x1xf32>
    %79 = vector.broadcast %78 : vector<16x1xf32> to vector<16x16xf32>
    %80 = arith.mulf %73, %79 : vector<16x16xf32>
    %cst_40 = arith.constant dense<0.000000e+00> : vector<16x8xf32>
    %81 = tpu.matmul %80, %51, %cst_40 {dimension_numbers = #tpu.dot_dimension_numbers<[1], [0], [0], [1], [0, 0, 1, 1], [], []>} : vector<16x16xf32>, vector<16x8xf32>, vector<16x8xf32> -> vector<16x8xf32>
    %82 = vector.extract_strided_slice %50 {offsets = [0, 0], sizes = [1, 8], strides = [1, 1]} : vector<1x16xf32> to vector<1x8xf32>
    %83 = vector.broadcast %82 : vector<1x8xf32> to vector<16x8xf32>
    %84 = arith.addf %81, %83 : vector<16x8xf32>
    %cst_41 = arith.constant 0.000000e+00 : f32
    %85 = vector.broadcast %cst_41 : f32 to vector<16x8xf32>
    %86 = arith.cmpf ogt, %84, %85 : vector<16x8xf32>
    %87 = math.exp %84 : vector<16x8xf32>
    %cst_42 = arith.constant 1.000000e+00 : f32
    %88 = vector.broadcast %cst_42 : f32 to vector<16x8xf32>
    %89 = arith.subf %87, %88 : vector<16x8xf32>
    %90 = arith.select %86, %84, %89 : vector<16x8xi1>, vector<16x8xf32>
    %91 = vector.extract_strided_slice %49 {offsets = [0, 8], sizes = [16, 8], strides = [1, 1]} : vector<16x16xf32> to vector<16x8xf32>
    %c1 = arith.constant 1 : index
    %c0_43 = arith.constant 0 : index
    %92 = vector.load %arg7[%c1, %c0_43] : memref<2x8xf32, #tpu.memory_space<vmem>>, vector<1x8xf32>
    %c1_44 = arith.constant 1 : index
    %c0_45 = arith.constant 0 : index
    %93 = vector.load %arg8[%c1_44, %c0_45] : memref<2x8xf32, #tpu.memory_space<vmem>>, vector<1x8xf32>
    %94 = vector.broadcast %93 : vector<1x8xf32> to vector<16x8xf32>
    %95 = arith.mulf %91, %94 : vector<16x8xf32>
    %cst_46 = arith.constant dense<0.000000e+00> : vector<16xf32>
    %96 = vector.multi_reduction <add>, %95, %cst_46 [1] : vector<16x8xf32> to vector<16xf32>
    %97 = vector.shape_cast %96 : vector<16xf32> to vector<16x1xf32>
    %cst_47 = arith.constant dense<0.000000e+00> : vector<1x16xf32>
    %98 = tpu.matmul %92, %91, %cst_47 {dimension_numbers = #tpu.dot_dimension_numbers<[1], [1], [0], [0], [0, 0, 1, 0], [], []>} : vector<1x8xf32>, vector<16x8xf32>, vector<1x16xf32> -> vector<1x16xf32>
    %99 = vector.broadcast %97 : vector<16x1xf32> to vector<16x16xf32>
    %100 = vector.broadcast %98 : vector<1x16xf32> to vector<16x16xf32>
    %101 = arith.addf %99, %100 : vector<16x16xf32>
    %cst_48 = arith.constant 0.000000e+00 : f32
    %102 = vector.broadcast %cst_48 : f32 to vector<16x16xf32>
    %103 = arith.cmpf ogt, %101, %102 : vector<16x16xf32>
    %cst_49 = arith.constant 2.000000e-01 : f32
    %104 = vector.broadcast %cst_49 : f32 to vector<16x16xf32>
    %105 = arith.mulf %104, %101 : vector<16x16xf32>
    %106 = arith.select %103, %101, %105 : vector<16x16xi1>, vector<16x16xf32>
    %107 = arith.addf %106, %5 : vector<16x16xf32>
    %cst_50 = arith.constant dense<0xFF800000> : vector<16xf32>
    %108 = vector.multi_reduction <maximumf>, %107, %cst_50 [1] : vector<16x16xf32> to vector<16xf32>
    %109 = vector.shape_cast %108 : vector<16xf32> to vector<16x1xf32>
    %110 = vector.broadcast %109 : vector<16x1xf32> to vector<16x16xf32>
    %111 = arith.subf %107, %110 : vector<16x16xf32>
    %112 = math.exp %111 : vector<16x16xf32>
    %113 = arith.mulf %112, %0 : vector<16x16xf32>
    %cst_51 = arith.constant dense<0.000000e+00> : vector<16xf32>
    %114 = vector.multi_reduction <add>, %113, %cst_51 [1] : vector<16x16xf32> to vector<16xf32>
    %115 = vector.shape_cast %114 : vector<16xf32> to vector<16x1xf32>
    %cst_52 = arith.constant 9.99999971E-10 : f32
    %116 = vector.broadcast %cst_52 : f32 to vector<16x1xf32>
    %117 = arith.maximumf %115, %116 : vector<16x1xf32>
    %118 = tpu.reciprocal %117 {approx = true} : vector<16x1xf32> -> vector<16x1xf32>
    %119 = vector.broadcast %118 : vector<16x1xf32> to vector<16x16xf32>
    %120 = arith.mulf %113, %119 : vector<16x16xf32>
    %cst_53 = arith.constant dense<0.000000e+00> : vector<16x8xf32>
    %121 = tpu.matmul %120, %91, %cst_53 {dimension_numbers = #tpu.dot_dimension_numbers<[1], [0], [0], [1], [0, 0, 1, 1], [], []>} : vector<16x16xf32>, vector<16x8xf32>, vector<16x8xf32> -> vector<16x8xf32>
    %122 = vector.extract_strided_slice %50 {offsets = [0, 8], sizes = [1, 8], strides = [1, 1]} : vector<1x16xf32> to vector<1x8xf32>
    %123 = vector.broadcast %122 : vector<1x8xf32> to vector<16x8xf32>
    %124 = arith.addf %121, %123 : vector<16x8xf32>
    %cst_54 = arith.constant 0.000000e+00 : f32
    %125 = vector.broadcast %cst_54 : f32 to vector<16x8xf32>
    %126 = arith.cmpf ogt, %124, %125 : vector<16x8xf32>
    %127 = math.exp %124 : vector<16x8xf32>
    %cst_55 = arith.constant 1.000000e+00 : f32
    %128 = vector.broadcast %cst_55 : f32 to vector<16x8xf32>
    %129 = arith.subf %127, %128 : vector<16x8xf32>
    %130 = arith.select %126, %124, %129 : vector<16x8xi1>, vector<16x8xf32>
    %131 = tpu.concatenate %90, %130 in 1 : vector<16x8xf32>, vector<16x8xf32> -> vector<16x16xf32>
    %c0_56 = arith.constant 0 : index
    %c0_57 = arith.constant 0 : index
    %132 = vector.load %arg13[%c0_56, %c0_57] : memref<16x16xf32, #tpu.memory_space<vmem>>, vector<16x16xf32>
    tpu.vector_store %arg13[%c0_56, %c0_57], %131 {strides = array<i32>} : memref<16x16xf32, #tpu.memory_space<vmem>>, vector<16x16xf32>,
    %cst_58 = arith.constant dense<0.000000e+00> : vector<16xf32>
    %133 = vector.multi_reduction <add>, %131, %cst_58 [0] : vector<16x16xf32> to vector<16xf32>
    %134 = vector.shape_cast %133 : vector<16xf32> to vector<1x16xf32>
    %cst_59 = arith.constant 6.250000e-02 : f32
    %135 = vector.broadcast %cst_59 : f32 to vector<1x16xf32>
    %136 = arith.mulf %134, %135 : vector<1x16xf32>
    %c0_60 = arith.constant 0 : index
    %c0_61 = arith.constant 0 : index
    %137 = vector.load %arg10[%c0_60, %c0_61] : memref<16x3xf32, #tpu.memory_space<vmem>>, vector<16x3xf32>
    %cst_62 = arith.constant dense<0.000000e+00> : vector<1x3xf32>
    %138 = tpu.matmul %136, %137, %cst_62 {dimension_numbers = #tpu.dot_dimension_numbers<[1], [0], [0], [1], [0, 0, 1, 1], [], []>} : vector<1x16xf32>, vector<16x3xf32>, vector<1x3xf32> -> vector<1x3xf32>
    %c0_63 = arith.constant 0 : index
    %c0_64 = arith.constant 0 : index
    %139 = vector.load %arg11[%c0_63, %c0_64] : memref<1x3xf32, #tpu.memory_space<vmem>>, vector<1x3xf32>
    %140 = arith.addf %138, %139 : vector<1x3xf32>
    %c0_65 = arith.constant 0 : index
    %c0_66 = arith.constant 0 : index
    %141 = vector.load %arg12[%c0_65, %c0_66] : memref<1x3xf32, #tpu.memory_space<vmem>>, vector<1x3xf32>
    tpu.vector_store %arg12[%c0_65, %c0_66], %140 {strides = array<i32>} : memref<1x3xf32, #tpu.memory_space<vmem>>, vector<1x3xf32>,
    return
  }
}

</mosaic_0001>

<llo_original>
// kernel: gat_forward.1
$region0: #{gat_forward.1}
  #allocation0 [shape = 'u32[]', space=smem, size = 0x4, offset = 0x4, fixed_abs, tag = 'smem constant byte address 0x4 - core index']
  #allocation1 [shape = 'u32[144,128]{1,0:T(1,128)}', space=vmem, size = 0x12000, scoped, tag = 'internal scratch']
  %s0 = inlined_call_operand.vmem [shape: f32[16,4], index: 0, kind: input, shape index: {}]
  %s1 = inlined_call_operand.vmem [shape: f32[16,16], index: 1, kind: input, shape index: {}]
  %s2 = inlined_call_operand.vmem [shape: f32[4,8], index: 2, kind: input, shape index: {}]
  %s3 = inlined_call_operand.vmem [shape: f32[1,8], index: 3, kind: input, shape index: {}]
  %s4 = inlined_call_operand.vmem [shape: f32[1,8], index: 4, kind: input, shape index: {}]
  %s5 = inlined_call_operand.vmem [shape: f32[1,8], index: 5, kind: input, shape index: {}]
  %s6 = inlined_call_operand.vmem [shape: f32[8,16], index: 6, kind: input, shape index: {}]
  %s7 = inlined_call_operand.vmem [shape: f32[2,8], index: 7, kind: input, shape index: {}]
  %s8 = inlined_call_operand.vmem [shape: f32[2,8], index: 8, kind: input, shape index: {}]
  %s9 = inlined_call_operand.vmem [shape: f32[1,16], index: 9, kind: input, shape index: {}]
  %s10 = inlined_call_operand.vmem [shape: f32[16,3], index: 10, kind: input, shape index: {}]
  %s11 = inlined_call_operand.vmem [shape: f32[1,3], index: 11, kind: input, shape index: {}]
  %s12 = inlined_call_operand.hbm [shape: f32[1,3], index: 12, kind: output, shape index: {0}]
  %s13 = inlined_call_operand.hbm [shape: f32[16,16], index: 13, kind: output, shape index: {1}]
  %14 = xla_tuple %s12, %s13
  %s15 = sld [smem:[#allocation0]]
  $region66: #{gat_forward.1} parent=0
    _
  %s17 = ssub.s32 1, %s15
  %s18 = scalar_select 0, %s17, %s15
  $region1: #{gat_forward.1} parent=0
    #allocation2 [shape = 'u8[512]{0}', space=vmem, size = 0x400, scoped, tag = 'output window, operand 0, single buffered']
    #allocation3 [shape = 's32[1]{0}', space=sflag, size = 0x4, scoped, tag = 'scoped memory for gat_forward.1']
    #allocation4 [shape = 'u8[8192]{0}', space=vmem, size = 0x2000, scoped, tag = 'output window, operand 1, single buffered']
    #allocation5 [shape = 's32[1]{0}', space=sflag, size = 0x4, scoped, tag = 'scoped memory for gat_forward.1']
    %19 = vsyncpa [#allocation3], 0
    %20 = vsyncpa [#allocation5], 0
    // Predicated region
    $region2: #{gat_forward.1} parent=1 // pred_check
      _
    $region3: #{gat_forward.1} parent=1 // pred_check_branch
      %22 = sbr.rel (0) target = $region5
    $region4: #{gat_forward.1} parent=1 // pred_region
      _
    $region5: #{gat_forward.1} parent=1 // pred_fallthru
      _
    // Predicated region
    $region6: #{gat_forward.1} parent=1 // pred_check
      _
    $region7: #{gat_forward.1} parent=1 // pred_check_branch
      %24 = sbr.rel (0) target = $region9
    $region8: #{gat_forward.1} parent=1 // pred_region
      _
    $region9: #{gat_forward.1} parent=1 // pred_fallthru
      _
    // Predicated region
    $region10: #{gat_forward.1} parent=1 // pred_check
      _
    $region11: #{gat_forward.1} parent=1 // pred_check_branch
      %26 = sbr.rel (0) target = $region13
    $region12: #{gat_forward.1} parent=1 // pred_region
      _
    $region13: #{gat_forward.1} parent=1 // pred_fallthru
      _
    // Predicated region
    $region14: #{gat_forward.1} parent=1 // pred_check
      _
    $region15: #{gat_forward.1} parent=1 // pred_check_branch
      %28 = sbr.rel (0) target = $region17
    $region16: #{gat_forward.1} parent=1 // pred_region
      _
    $region17: #{gat_forward.1} parent=1 // pred_fallthru
      _
    // Predicated region
    $region18: #{gat_forward.1} parent=1 // pred_check
      _
    $region19: #{gat_forward.1} parent=1 // pred_check_branch
      %30 = sbr.rel (0) target = $region21
    $region20: #{gat_forward.1} parent=1 // pred_region
      _
    $region21: #{gat_forward.1} parent=1 // pred_fallthru
      _
    // Predicated region
    $region22: #{gat_forward.1} parent=1 // pred_check
      _
    $region23: #{gat_forward.1} parent=1 // pred_check_branch
      %32 = sbr.rel (0) target = $region25
    $region24: #{gat_forward.1} parent=1 // pred_region
      _
    $region25: #{gat_forward.1} parent=1 // pred_fallthru
      _
    // Predicated region
    $region26: #{gat_forward.1} parent=1 // pred_check
      _
    $region27: #{gat_forward.1} parent=1 // pred_check_branch
      %34 = sbr.rel (0) target = $region29
    $region28: #{gat_forward.1} parent=1 // pred_region
      _
    $region29: #{gat_forward.1} parent=1 // pred_fallthru
      _
    // Predicated region
    $region30: #{gat_forward.1} parent=1 // pred_check
      _
    $region31: #{gat_forward.1} parent=1 // pred_check_branch
      %36 = sbr.rel (0) target = $region33
    $region32: #{gat_forward.1} parent=1 // pred_region
      _
    $region33: #{gat_forward.1} parent=1 // pred_fallthru
      _
    // Predicated region
    $region34: #{gat_forward.1} parent=1 // pred_check
      _
    $region35: #{gat_forward.1} parent=1 // pred_check_branch
      %38 = sbr.rel (0) target = $region37
    $region36: #{gat_forward.1} parent=1 // pred_region
      _
    $region37: #{gat_forward.1} parent=1 // pred_fallthru
      _
    // Predicated region
    $region38: #{gat_forward.1} parent=1 // pred_check
      _
    $region39: #{gat_forward.1} parent=1 // pred_check_branch
      %40 = sbr.rel (0) target = $region41
    $region40: #{gat_forward.1} parent=1 // pred_region
      _
    $region41: #{gat_forward.1} parent=1 // pred_fallthru
      _
    // Predicated region
    $region42: #{gat_forward.1} parent=1 // pred_check
      _
    $region43: #{gat_forward.1} parent=1 // pred_check_branch
      %42 = sbr.rel (0) target = $region45
    $region44: #{gat_forward.1} parent=1 // pred_region
      _
    $region45: #{gat_forward.1} parent=1 // pred_fallthru
      _
    // Predicated region
    $region46: #{gat_forward.1} parent=1 // pred_check
      _
    $region47: #{gat_forward.1} parent=1 // pred_check_branch
      %44 = sbr.rel (0) target = $region49
    $region48: #{gat_forward.1} parent=1 // pred_region
      _
    $region49: #{gat_forward.1} parent=1 // pred_fallthru
      _
    %v45 = vld [vmem:[%s1] sm:$0xff]
    %v46 = vld [vmem:[%s1 + $0x8] sm:$0xff]
    %vm47 = vcmp.gt.f32.partialorder %v45, 0.0
    %vm48 = vcmp.gt.f32.partialorder %v46, 0.0
    %v49 = vsel %vm47, 0.0, -1e+30
    %v50 = vsel %vm48, 0.0, -1e+30
    %v51 = vld [vmem:[%s0] sm:$0xff]
    %v52 = vld [vmem:[%s0 + $0x8] sm:$0xff]
    %v53 = vld [vmem:[%s2] sm:$0xf]
    %vm54 = vcmask 31744
    %v56 = vsel %vm54, %v51, 0
    %v59 = vsel %vm54, %v52, 0
    %vm61 = vcmask 1043456
    %v63 = vsel %vm61, %v53, 0
    %65 = vmatprep.subr.mxu0 0.0
    %66 = vmatpush1.msra.mxu0 0.0
    %67 = vmatprep.subr.mxu0 0.0
    %68 = vmatpush1.msra.mxu0 0.0
    %69 = vmatprep.subr.mxu0 0.0
    %70 = vmatpush1.msra.mxu0 0.0
    %71 = vmatprep.subr.mxu0 0.0
    %72 = vmatpush1.msra.mxu0 0.0
    %73 = vmatprep.subr.mxu0 0.0
    %74 = vmatpush1.msra.mxu0 0.0
    %75 = vmatprep.subr.mxu0 0.0
    %76 = vmatpush1.msra.mxu0 0.0
    %77 = vmatprep.subr.mxu0 0.0
    %78 = vmatpush1.msra.mxu0 0.0
    %79 = vmatprep.subr.mxu0 0.0
    %80 = vmatpush1.msra.mxu0 0.0
    %81 = vmatprep.subr.mxu0 0.0
    %82 = vmatpush1.msra.mxu0 0.0
    %83 = vmatprep.subr.mxu0 0.0
    %84 = vmatpush1.msra.mxu0 0.0
    %85 = vmatprep.subr.mxu0 0.0
    %86 = vmatpush1.msra.mxu0 0.0
    %87 = vmatprep.subr.mxu0 0.0
    %88 = vmatpush1.msra.mxu0 0.0
    %89 = vmatprep.subr.mxu0 0.0
    %90 = vmatpush1.msra.mxu0 0.0
    %91 = vmatprep.subr.mxu0 0.0
    %92 = vmatpush1.msra.mxu0 0.0
    %93 = vmatprep.subr.mxu0 0.0
    %94 = vmatpush1.msra.mxu0 0.0
    %95 = vmatprep.subr.mxu0 0.0
    %96 = vmatpush1.msra.mxu0 %v63
    %97 = vmatprep.subr.mxu0 0.0
    %98 = vmatpush2.msra.mxu0 0.0
    %99 = vmatprep.subr.mxu0 0.0
    %100 = vmatpush2.msra.mxu0 0.0
    %101 = vmatprep.subr.mxu0 0.0
    %102 = vmatpush2.msra.mxu0 0.0
    %103 = vmatprep.subr.mxu0 0.0
    %104 = vmatpush2.msra.mxu0 0.0
    %105 = vmatprep.subr.mxu0 0.0
    %106 = vmatpush2.msra.mxu0 0.0
    %107 = vmatprep.subr.mxu0 0.0
    %108 = vmatpush2.msra.mxu0 0.0
    %109 = vmatprep.subr.mxu0 0.0
    %110 = vmatpush2.msra.mxu0 0.0
    %111 = vmatprep.subr.mxu0 0.0
    %112 = vmatpush2.msra.mxu0 0.0
    %113 = vmatprep.subr.mxu0 0.0
    %114 = vmatpush2.msra.mxu0 0.0
    %115 = vmatprep.subr.mxu0 0.0
    %116 = vmatpush2.msra.mxu0 0.0
    %117 = vmatprep.subr.mxu0 0.0
    %118 = vmatpush2.msra.mxu0 0.0
    %119 = vmatprep.subr.mxu0 0.0
    %120 = vmatpush2.msra.mxu0 0.0
    %121 = vmatprep.subr.mxu0 0.0
    %122 = vmatpush2.msra.mxu0 0.0
    %123 = vmatprep.subr.mxu0 0.0
    %124 = vmatpush2.msra.mxu0 0.0
    %125 = vmatprep.subr.mxu0 0.0
    %126 = vmatpush2.msra.mxu0 0.0
    %127 = vmatprep.subr.mxu0 0.0
    %128 = vmatpush2.msra.mxu0 0.0
    %129 = vmatprep.mubr.f32.mxu0 0.0
    %130 = vmatmul.mubr.f32.gmra.mxu0 %v56
    %v131 = vpop.f32.mrf.mxu0
    %v132 = vadd.f32 0.0, %v131
    %v133 = vpop.f32.mrf.mxu0
    %134 = vmatprep.mubr.f32.mxu0 0.0
    %135 = vmatmul.mubr.f32.gmra.mxu0 %v59
    %v136 = vpop.f32.mrf.mxu0
    %v137 = vadd.f32 0.0, %v136
    %v138 = vpop.f32.mrf.mxu0
    %139 = vdwg.mxu0
    %v140 = vld [vmem:[%s5] sm:$0x1]
    %v141 = vld [vmem:[%s3] sm:$0x1]
    %v142 = vld [vmem:[%s4] sm:$0x1]
    %v144 = vlaneseq
    %v145 = vshrl.u32 %v144, 7
    %v146 = vsub.s32 0, %v145
    %v147 = vrot.slane %v142, %v146
    %v149 = vmul.f32 %v132, %v147
    %v150 = vmul.f32 %v137, %v147
    %vm151 = vcmask 64512
    %v152 = vsel %vm151, %v149, 0.0
    %153 = vadd.xlane.f32.xlu0 %v152
    %v154 = vpop.xlane.xlu0 %153
    %v155 = vsel %vm151, %v150, 0.0
    %156 = vadd.xlane.f32.xlu0 %v155
    %v157 = vpop.xlane.xlu0 %156
    %v159 = vsel %vm151, %v141, 0
    %v162 = vsel %vm151, %v132, 0
    %v165 = vsel %vm151, %v137, 0
    %167 = vmatprep.subr.mxu0 0.0
    %168 = vmatpush1.xpose.msra.mxu0 0.0
    %169 = vmatprep.subr.mxu0 0.0
    %170 = vmatpush1.xpose.msra.mxu0 0.0
    %171 = vmatprep.subr.mxu0 0.0
    %172 = vmatpush1.xpose.msra.mxu0 0.0
    %173 = vmatprep.subr.mxu0 0.0
    %174 = vmatpush1.xpose.msra.mxu0 0.0
    %175 = vmatprep.subr.mxu0 0.0
    %176 = vmatpush1.xpose.msra.mxu0 0.0
    %177 = vmatprep.subr.mxu0 0.0
    %178 = vmatpush1.xpose.msra.mxu0 0.0
    %179 = vmatprep.subr.mxu0 0.0
    %180 = vmatpush1.xpose.msra.mxu0 0.0
    %181 = vmatprep.subr.mxu0 0.0
    %182 = vmatpush1.xpose.msra.mxu0 0.0
    %183 = vmatprep.subr.mxu0 0.0
    %184 = vmatpush1.xpose.msra.mxu0 0.0
    %185 = vmatprep.subr.mxu0 0.0
    %186 = vmatpush1.xpose.msra.mxu0 0.0
    %187 = vmatprep.subr.mxu0 0.0
    %188 = vmatpush1.xpose.msra.mxu0 0.0
    %189 = vmatprep.subr.mxu0 0.0
    %190 = vmatpush1.xpose.msra.mxu0 0.0
    %191 = vmatprep.subr.mxu0 0.0
    %192 = vmatpush1.xpose.msra.mxu0 0.0
    %193 = vmatprep.subr.mxu0 0.0
    %194 = vmatpush1.xpose.msra.mxu0 0.0
    %195 = vmatprep.subr.mxu0 0.0
    %196 = vmatpush1.xpose.msra.mxu0 %v165
    %197 = vmatprep.subr.mxu0 0.0
    %198 = vmatpush1.xpose.msra.mxu0 %v162
    %199 = vmatprep.subr.mxu0 0.0
    %200 = vmatpush2.xpose.msra.mxu0 0.0
    %201 = vmatprep.subr.mxu0 0.0
    %202 = vmatpush2.xpose.msra.mxu0 0.0
    %203 = vmatprep.subr.mxu0 0.0
    %204 = vmatpush2.xpose.msra.mxu0 0.0
    %205 = vmatprep.subr.mxu0 0.0
    %206 = vmatpush2.xpose.msra.mxu0 0.0
    %207 = vmatprep.subr.mxu0 0.0
    %208 = vmatpush2.xpose.msra.mxu0 0.0
    %209 = vmatprep.subr.mxu0 0.0
    %210 = vmatpush2.xpose.msra.mxu0 0.0
    %211 = vmatprep.subr.mxu0 0.0
    %212 = vmatpush2.xpose.msra.mxu0 0.0
    %213 = vmatprep.subr.mxu0 0.0
    %214 = vmatpush2.xpose.msra.mxu0 0.0
    %215 = vmatprep.subr.mxu0 0.0
    %216 = vmatpush2.xpose.msra.mxu0 0.0
    %217 = vmatprep.subr.mxu0 0.0
    %218 = vmatpush2.xpose.msra.mxu0 0.0
    %219 = vmatprep.subr.mxu0 0.0
    %220 = vmatpush2.xpose.msra.mxu0 0.0
    %221 = vmatprep.subr.mxu0 0.0
    %222 = vmatpush2.xpose.msra.mxu0 0.0
    %223 = vmatprep.subr.mxu0 0.0
    %224 = vmatpush2.xpose.msra.mxu0 0.0
    %225 = vmatprep.subr.mxu0 0.0
    %226 = vmatpush2.xpose.msra.mxu0 0.0
    %227 = vmatprep.subr.mxu0 0.0
    %228 = vmatpush2.xpose.msra.mxu0 0.0
    %229 = vmatprep.subr.mxu0 0.0
    %230 = vmatpush2.xpose.msra.mxu0 0.0
    %231 = vmatprep.mubr.f32.mxu0 0.0
    %232 = vmatmul.mubr.f32.gmra.mxu0 %v159
    %v233 = vpop.f32.mrf.mxu0
    %v234 = vadd.f32 0.0, %v233
    %v235 = vpop.f32.mrf.mxu0
    %236 = vdwg.mxu0
    %v237 = vlaneseq
    %v238 = vshrl.u32 %v237, 7
    %v239 = vsub.s32 0, %v238
    %v240 = vrot.slane %v234, %v239
    %v241 = vadd.f32 %v154, %v240
    %v242 = vadd.f32 %v157, %v240
    %vm243 = vcmp.gt.f32.partialorder %v241, 0.0
    %vm244 = vcmp.gt.f32.partialorder %v242, 0.0
    %v245 = vmul.f32 %v241, 0.2
    %v246 = vmul.f32 %v242, 0.2
    %v247 = vsel %vm243, %v241, %v245
    %v248 = vsel %vm244, %v242, %v246
    %v249 = vadd.f32 %v247, %v49
    %v250 = vadd.f32 %v248, %v50
    %vm251 = vcmask 130048
    %v252 = vsel %vm251, %v249, -inf
    %253 = vmax.xlane.f32.xlu0 %v252
    %v254 = vpop.xlane.xlu0 %253
    %v255 = vsel %vm251, %v250, -inf
    %256 = vmax.xlane.f32.xlu0 %v255
    %v257 = vpop.xlane.xlu0 %256
    %v258 = vsub.f32 %v249, %v254
    %v259 = vsub.f32 %v250, %v257
    %v260 = vmul.f32 %v258, 1.442695
    %v261 = vpow.pop %v260
    %v262 = vmul.f32 %v259, 1.442695
    %v263 = vpow.pop %v262
    %v264 = vmul.f32 %v261, %v45
    %v265 = vmul.f32 %v263, %v46
    %v266 = vsel %vm251, %v264, 0.0
    %267 = vadd.xlane.f32.xlu0 %v266
    %v268 = vpop.xlane.xlu0 %267
    %v269 = vsel %vm251, %v265, 0.0
    %270 = vadd.xlane.f32.xlu0 %v269
    %v271 = vpop.xlane.xlu0 %270
    %v272 = vmax.f32 %v268, 1e-09
    %v273 = vmax.f32 %v271, 1e-09
    %v274 = vrcp.pop %v272
    %v275 = vrcp.pop %v273
    %v276 = vmul.f32 %v264, %v274
    %v277 = vmul.f32 %v265, %v275
    %v279 = vlaneseq
    %v280 = vshrl.u32 %v279, 7
    %v281 = vsub.s32 0, %v280
    %v282 = vrot.slane %v140, %v281
    %v285 = vsel %vm251, %v276, 0
    %v288 = vsel %vm251, %v277, 0
    %290 = vmatprep.subr.mxu0 0.0
    %291 = vmatpush1.msra.mxu0 0.0
    %292 = vmatprep.subr.mxu0 0.0
    %293 = vmatpush1.msra.mxu0 0.0
    %294 = vmatprep.subr.mxu0 0.0
    %295 = vmatpush1.msra.mxu0 0.0
    %296 = vmatprep.subr.mxu0 0.0
    %297 = vmatpush1.msra.mxu0 0.0
    %298 = vmatprep.subr.mxu0 0.0
    %299 = vmatpush1.msra.mxu0 0.0
    %300 = vmatprep.subr.mxu0 0.0
    %301 = vmatpush1.msra.mxu0 0.0
    %302 = vmatprep.subr.mxu0 0.0
    %303 = vmatpush1.msra.mxu0 0.0
    %304 = vmatprep.subr.mxu0 0.0
    %305 = vmatpush1.msra.mxu0 0.0
    %306 = vmatprep.subr.mxu0 0.0
    %307 = vmatpush1.msra.mxu0 0.0
    %308 = vmatprep.subr.mxu0 0.0
    %309 = vmatpush1.msra.mxu0 0.0
    %310 = vmatprep.subr.mxu0 0.0
    %311 = vmatpush1.msra.mxu0 0.0
    %312 = vmatprep.subr.mxu0 0.0
    %313 = vmatpush1.msra.mxu0 0.0
    %314 = vmatprep.subr.mxu0 0.0
    %315 = vmatpush1.msra.mxu0 0.0
    %316 = vmatprep.subr.mxu0 0.0
    %317 = vmatpush1.msra.mxu0 0.0
    %318 = vmatprep.subr.mxu0 0.0
    %319 = vmatpush1.msra.mxu0 %v137
    %320 = vmatprep.subr.mxu0 0.0
    %321 = vmatpush1.msra.mxu0 %v132
    %322 = vmatprep.subr.mxu0 0.0
    %323 = vmatpush2.msra.mxu0 0.0
    %324 = vmatprep.subr.mxu0 0.0
    %325 = vmatpush2.msra.mxu0 0.0
    %326 = vmatprep.subr.mxu0 0.0
    %327 = vmatpush2.msra.mxu0 0.0
    %328 = vmatprep.subr.mxu0 0.0
    %329 = vmatpush2.msra.mxu0 0.0
    %330 = vmatprep.subr.mxu0 0.0
    %331 = vmatpush2.msra.mxu0 0.0
    %332 = vmatprep.subr.mxu0 0.0
    %333 = vmatpush2.msra.mxu0 0.0
    %334 = vmatprep.subr.mxu0 0.0
    %335 = vmatpush2.msra.mxu0 0.0
    %336 = vmatprep.subr.mxu0 0.0
    %337 = vmatpush2.msra.mxu0 0.0
    %338 = vmatprep.subr.mxu0 0.0
    %339 = vmatpush2.msra.mxu0 0.0
    %340 = vmatprep.subr.mxu0 0.0
    %341 = vmatpush2.msra.mxu0 0.0
    %342 = vmatprep.subr.mxu0 0.0
    %343 = vmatpush2.msra.mxu0 0.0
    %344 = vmatprep.subr.mxu0 0.0
    %345 = vmatpush2.msra.mxu0 0.0
    %346 = vmatprep.subr.mxu0 0.0
    %347 = vmatpush2.msra.mxu0 0.0
    %348 = vmatprep.subr.mxu0 0.0
    %349 = vmatpush2.msra.mxu0 0.0
    %350 = vmatprep.subr.mxu0 0.0
    %351 = vmatpush2.msra.mxu0 0.0
    %352 = vmatprep.subr.mxu0 0.0
    %353 = vmatpush2.msra.mxu0 0.0
    %354 = vmatprep.mubr.f32.mxu0 0.0
    %355 = vmatmul.mubr.f32.gmra.mxu0 %v285
    %v356 = vpop.f32.mrf.mxu0
    %v357 = vadd.f32 %v282, %v356
    %v358 = vpop.f32.mrf.mxu0
    %359 = vmatprep.mubr.f32.mxu0 0.0
    %360 = vmatmul.mubr.f32.gmra.mxu0 %v288
    %v361 = vpop.f32.mrf.mxu0
    %v362 = vadd.f32 %v282, %v361
    %v363 = vpop.f32.mrf.mxu0
    %364 = vdwg.mxu0
    %vm365 = vcmp.gt.f32.partialorder %v357, 0.0
    %vm366 = vcmp.gt.f32.partialorder %v362, 0.0
    %v367 = vmul.f32 %v357, 1.442695
    %v368 = vpow.pop %v367
    %v369 = vmul.f32 %v362, 1.442695
    %v370 = vpow.pop %v369
    %v371 = vsub.f32 %v368, 1.0
    %v372 = vsub.f32 %v370, 1.0
    %v373 = vsel %vm365, %v357, %v371
    %v374 = vsel %vm366, %v362, %v372
    %v375 = vld [vmem:[%s6] sm:$0xff]
    %v377 = vsel %vm151, %v373, 0
    %v380 = vsel %vm151, %v374, 0
    %382 = vmatprep.subr.mxu0 0.0
    %383 = vmatpush1.msra.mxu0 0.0
    %384 = vmatprep.subr.mxu0 0.0
    %385 = vmatpush1.msra.mxu0 0.0
    %386 = vmatprep.subr.mxu0 0.0
    %387 = vmatpush1.msra.mxu0 0.0
    %388 = vmatprep.subr.mxu0 0.0
    %389 = vmatpush1.msra.mxu0 0.0
    %390 = vmatprep.subr.mxu0 0.0
    %391 = vmatpush1.msra.mxu0 0.0
    %392 = vmatprep.subr.mxu0 0.0
    %393 = vmatpush1.msra.mxu0 0.0
    %394 = vmatprep.subr.mxu0 0.0
    %395 = vmatpush1.msra.mxu0 0.0
    %396 = vmatprep.subr.mxu0 0.0
    %397 = vmatpush1.msra.mxu0 0.0
    %398 = vmatprep.subr.mxu0 0.0
    %399 = vmatpush1.msra.mxu0 0.0
    %400 = vmatprep.subr.mxu0 0.0
    %401 = vmatpush1.msra.mxu0 0.0
    %402 = vmatprep.subr.mxu0 0.0
    %403 = vmatpush1.msra.mxu0 0.0
    %404 = vmatprep.subr.mxu0 0.0
    %405 = vmatpush1.msra.mxu0 0.0
    %406 = vmatprep.subr.mxu0 0.0
    %407 = vmatpush1.msra.mxu0 0.0
    %408 = vmatprep.subr.mxu0 0.0
    %409 = vmatpush1.msra.mxu0 0.0
    %410 = vmatprep.subr.mxu0 0.0
    %411 = vmatpush1.msra.mxu0 0.0
    %412 = vmatprep.subr.mxu0 0.0
    %413 = vmatpush1.msra.mxu0 %v375
    %414 = vmatprep.subr.mxu0 0.0
    %415 = vmatpush2.msra.mxu0 0.0
    %416 = vmatprep.subr.mxu0 0.0
    %417 = vmatpush2.msra.mxu0 0.0
    %418 = vmatprep.subr.mxu0 0.0
    %419 = vmatpush2.msra.mxu0 0.0
    %420 = vmatprep.subr.mxu0 0.0
    %421 = vmatpush2.msra.mxu0 0.0
    %422 = vmatprep.subr.mxu0 0.0
    %423 = vmatpush2.msra.mxu0 0.0
    %424 = vmatprep.subr.mxu0 0.0
    %425 = vmatpush2.msra.mxu0 0.0
    %426 = vmatprep.subr.mxu0 0.0
    %427 = vmatpush2.msra.mxu0 0.0
    %428 = vmatprep.subr.mxu0 0.0
    %429 = vmatpush2.msra.mxu0 0.0
    %430 = vmatprep.subr.mxu0 0.0
    %431 = vmatpush2.msra.mxu0 0.0
    %432 = vmatprep.subr.mxu0 0.0
    %433 = vmatpush2.msra.mxu0 0.0
    %434 = vmatprep.subr.mxu0 0.0
    %435 = vmatpush2.msra.mxu0 0.0
    %436 = vmatprep.subr.mxu0 0.0
    %437 = vmatpush2.msra.mxu0 0.0
    %438 = vmatprep.subr.mxu0 0.0
    %439 = vmatpush2.msra.mxu0 0.0
    %440 = vmatprep.subr.mxu0 0.0
    %441 = vmatpush2.msra.mxu0 0.0
    %442 = vmatprep.subr.mxu0 0.0
    %443 = vmatpush2.msra.mxu0 0.0
    %444 = vmatprep.subr.mxu0 0.0
    %445 = vmatpush2.msra.mxu0 0.0
    %446 = vmatprep.mubr.f32.mxu0 0.0
    %447 = vmatmul.mubr.f32.gmra.mxu0 %v377
    %v448 = vpop.f32.mrf.mxu0
    %v449 = vadd.f32 0.0, %v448
    %v450 = vpop.f32.mrf.mxu0
    %451 = vmatprep.mubr.f32.mxu0 0.0
    %452 = vmatmul.mubr.f32.gmra.mxu0 %v380
    %v453 = vpop.f32.mrf.mxu0
    %v454 = vadd.f32 0.0, %v453
    %v455 = vpop.f32.mrf.mxu0
    %456 = vdwg.mxu0
    %v457 = vld [vmem:[%s9] sm:$0x1]
    %v458 = vld [vmem:[%s7] sm:$0x1]
    %v459 = vld [vmem:[%s8] sm:$0x1]
    %v460 = vlaneseq
    %v461 = vshrl.u32 %v460, 7
    %v462 = vsub.s32 0, %v461
    %v463 = vrot.slane %v459, %v462
    %v464 = vmul.f32 %v449, %v463
    %v465 = vmul.f32 %v454, %v463
    %v466 = vsel %vm151, %v464, 0.0
    %467 = vadd.xlane.f32.xlu0 %v466
    %v468 = vpop.xlane.xlu0 %467
    %v469 = vsel %vm151, %v465, 0.0
    %470 = vadd.xlane.f32.xlu0 %v469
    %v471 = vpop.xlane.xlu0 %470
    %v473 = vsel %vm151, %v458, 0
    %v476 = vsel %vm151, %v449, 0
    %v479 = vsel %vm151, %v454, 0
    %481 = vmatprep.subr.mxu0 0.0
    %482 = vmatpush1.xpose.msra.mxu0 0.0
    %483 = vmatprep.subr.mxu0 0.0
    %484 = vmatpush1.xpose.msra.mxu0 0.0
    %485 = vmatprep.subr.mxu0 0.0
    %486 = vmatpush1.xpose.msra.mxu0 0.0
    %487 = vmatprep.subr.mxu0 0.0
    %488 = vmatpush1.xpose.msra.mxu0 0.0
    %489 = vmatprep.subr.mxu0 0.0
    %490 = vmatpush1.xpose.msra.mxu0 0.0
    %491 = vmatprep.subr.mxu0 0.0
    %492 = vmatpush1.xpose.msra.mxu0 0.0
    %493 = vmatprep.subr.mxu0 0.0
    %494 = vmatpush1.xpose.msra.mxu0 0.0
    %495 = vmatprep.subr.mxu0 0.0
    %496 = vmatpush1.xpose.msra.mxu0 0.0
    %497 = vmatprep.subr.mxu0 0.0
    %498 = vmatpush1.xpose.msra.mxu0 0.0
    %499 = vmatprep.subr.mxu0 0.0
    %500 = vmatpush1.xpose.msra.mxu0 0.0
    %501 = vmatprep.subr.mxu0 0.0
    %502 = vmatpush1.xpose.msra.mxu0 0.0
    %503 = vmatprep.subr.mxu0 0.0
    %504 = vmatpush1.xpose.msra.mxu0 0.0
    %505 = vmatprep.subr.mxu0 0.0
    %506 = vmatpush1.xpose.msra.mxu0 0.0
    %507 = vmatprep.subr.mxu0 0.0
    %508 = vmatpush1.xpose.msra.mxu0 0.0
    %509 = vmatprep.subr.mxu0 0.0
    %510 = vmatpush1.xpose.msra.mxu0 %v479
    %511 = vmatprep.subr.mxu0 0.0
    %512 = vmatpush1.xpose.msra.mxu0 %v476
    %513 = vmatprep.subr.mxu0 0.0
    %514 = vmatpush2.xpose.msra.mxu0 0.0
    %515 = vmatprep.subr.mxu0 0.0
    %516 = vmatpush2.xpose.msra.mxu0 0.0
    %517 = vmatprep.subr.mxu0 0.0
    %518 = vmatpush2.xpose.msra.mxu0 0.0
    %519 = vmatprep.subr.mxu0 0.0
    %520 = vmatpush2.xpose.msra.mxu0 0.0
    %521 = vmatprep.subr.mxu0 0.0
    %522 = vmatpush2.xpose.msra.mxu0 0.0
    %523 = vmatprep.subr.mxu0 0.0
    %524 = vmatpush2.xpose.msra.mxu0 0.0
    %525 = vmatprep.subr.mxu0 0.0
    %526 = vmatpush2.xpose.msra.mxu0 0.0
    %527 = vmatprep.subr.mxu0 0.0
    %528 = vmatpush2.xpose.msra.mxu0 0.0
    %529 = vmatprep.subr.mxu0 0.0
    %530 = vmatpush2.xpose.msra.mxu0 0.0
    %531 = vmatprep.subr.mxu0 0.0
    %532 = vmatpush2.xpose.msra.mxu0 0.0
    %533 = vmatprep.subr.mxu0 0.0
    %534 = vmatpush2.xpose.msra.mxu0 0.0
    %535 = vmatprep.subr.mxu0 0.0
    %536 = vmatpush2.xpose.msra.mxu0 0.0
    %537 = vmatprep.subr.mxu0 0.0
    %538 = vmatpush2.xpose.msra.mxu0 0.0
    %539 = vmatprep.subr.mxu0 0.0
    %540 = vmatpush2.xpose.msra.mxu0 0.0
    %541 = vmatprep.subr.mxu0 0.0
    %542 = vmatpush2.xpose.msra.mxu0 0.0
    %543 = vmatprep.subr.mxu0 0.0
    %544 = vmatpush2.xpose.msra.mxu0 0.0
    %545 = vmatprep.mubr.f32.mxu0 0.0
    %546 = vmatmul.mubr.f32.gmra.mxu0 %v473
    %v547 = vpop.f32.mrf.mxu0
    %v548 = vadd.f32 0.0, %v547
    %v549 = vpop.f32.mrf.mxu0
    %550 = vdwg.mxu0
    %v551 = vlaneseq
    %v552 = vshrl.u32 %v551, 7
    %v553 = vsub.s32 0, %v552
    %v554 = vrot.slane %v548, %v553
    %v555 = vadd.f32 %v468, %v554
    %v556 = vadd.f32 %v471, %v554
    %vm557 = vcmp.gt.f32.partialorder %v555, 0.0
    %vm558 = vcmp.gt.f32.partialorder %v556, 0.0
    %v559 = vmul.f32 %v555, 0.2
    %v560 = vmul.f32 %v556, 0.2
    %v561 = vsel %vm557, %v555, %v559
    %v562 = vsel %vm558, %v556, %v560
    %v563 = vadd.f32 %v561, %v49
    %v564 = vadd.f32 %v562, %v50
    %v565 = vsel %vm251, %v563, -inf
    %566 = vmax.xlane.f32.xlu0 %v565
    %v567 = vpop.xlane.xlu0 %566
    %v568 = vsel %vm251, %v564, -inf
    %569 = vmax.xlane.f32.xlu0 %v568
    %v570 = vpop.xlane.xlu0 %569
    %v571 = vsub.f32 %v563, %v567
    %v572 = vsub.f32 %v564, %v570
    %v573 = vmul.f32 %v571, 1.442695
    %v574 = vpow.pop %v573
    %v575 = vmul.f32 %v572, 1.442695
    %v576 = vpow.pop %v575
    %v577 = vmul.f32 %v574, %v45
    %v578 = vmul.f32 %v576, %v46
    %v579 = vsel %vm251, %v577, 0.0
    %580 = vadd.xlane.f32.xlu0 %v579
    %v581 = vpop.xlane.xlu0 %580
    %v582 = vsel %vm251, %v578, 0.0
    %583 = vadd.xlane.f32.xlu0 %v582
    %v584 = vpop.xlane.xlu0 %583
    %v585 = vmax.f32 %v581, 1e-09
    %v586 = vmax.f32 %v584, 1e-09
    %v587 = vrcp.pop %v585
    %v588 = vrcp.pop %v586
    %v589 = vmul.f32 %v577, %v587
    %v590 = vmul.f32 %v578, %v588
    %v592 = vlaneseq
    %v593 = vshrl.u32 %v592, 7
    %v594 = vsub.s32 0, %v593
    %v595 = vrot.slane %v457, %v594
    %v598 = vsel %vm251, %v589, 0
    %v601 = vsel %vm251, %v590, 0
    %603 = vmatprep.subr.mxu0 0.0
    %604 = vmatpush1.msra.mxu0 0.0
    %605 = vmatprep.subr.mxu0 0.0
    %606 = vmatpush1.msra.mxu0 0.0
    %607 = vmatprep.subr.mxu0 0.0
    %608 = vmatpush1.msra.mxu0 0.0
    %609 = vmatprep.subr.mxu0 0.0
    %610 = vmatpush1.msra.mxu0 0.0
    %611 = vmatprep.subr.mxu0 0.0
    %612 = vmatpush1.msra.mxu0 0.0
    %613 = vmatprep.subr.mxu0 0.0
    %614 = vmatpush1.msra.mxu0 0.0
    %615 = vmatprep.subr.mxu0 0.0
    %616 = vmatpush1.msra.mxu0 0.0
    %617 = vmatprep.subr.mxu0 0.0
    %618 = vmatpush1.msra.mxu0 0.0
    %619 = vmatprep.subr.mxu0 0.0
    %620 = vmatpush1.msra.mxu0 0.0
    %621 = vmatprep.subr.mxu0 0.0
    %622 = vmatpush1.msra.mxu0 0.0
    %623 = vmatprep.subr.mxu0 0.0
    %624 = vmatpush1.msra.mxu0 0.0
    %625 = vmatprep.subr.mxu0 0.0
    %626 = vmatpush1.msra.mxu0 0.0
    %627 = vmatprep.subr.mxu0 0.0
    %628 = vmatpush1.msra.mxu0 0.0
    %629 = vmatprep.subr.mxu0 0.0
    %630 = vmatpush1.msra.mxu0 0.0
    %631 = vmatprep.subr.mxu0 0.0
    %632 = vmatpush1.msra.mxu0 %v454
    %633 = vmatprep.subr.mxu0 0.0
    %634 = vmatpush1.msra.mxu0 %v449
    %635 = vmatprep.subr.mxu0 0.0
    %636 = vmatpush2.msra.mxu0 0.0
    %637 = vmatprep.subr.mxu0 0.0
    %638 = vmatpush2.msra.mxu0 0.0
    %639 = vmatprep.subr.mxu0 0.0
    %640 = vmatpush2.msra.mxu0 0.0
    %641 = vmatprep.subr.mxu0 0.0
    %642 = vmatpush2.msra.mxu0 0.0
    %643 = vmatprep.subr.mxu0 0.0
    %644 = vmatpush2.msra.mxu0 0.0
    %645 = vmatprep.subr.mxu0 0.0
    %646 = vmatpush2.msra.mxu0 0.0
    %647 = vmatprep.subr.mxu0 0.0
    %648 = vmatpush2.msra.mxu0 0.0
    %649 = vmatprep.subr.mxu0 0.0
    %650 = vmatpush2.msra.mxu0 0.0
    %651 = vmatprep.subr.mxu0 0.0
    %652 = vmatpush2.msra.mxu0 0.0
    %653 = vmatprep.subr.mxu0 0.0
    %654 = vmatpush2.msra.mxu0 0.0
    %655 = vmatprep.subr.mxu0 0.0
    %656 = vmatpush2.msra.mxu0 0.0
    %657 = vmatprep.subr.mxu0 0.0
    %658 = vmatpush2.msra.mxu0 0.0
    %659 = vmatprep.subr.mxu0 0.0
    %660 = vmatpush2.msra.mxu0 0.0
    %661 = vmatprep.subr.mxu0 0.0
    %662 = vmatpush2.msra.mxu0 0.0
    %663 = vmatprep.subr.mxu0 0.0
    %664 = vmatpush2.msra.mxu0 0.0
    %665 = vmatprep.subr.mxu0 0.0
    %666 = vmatpush2.msra.mxu0 0.0
    %667 = vmatprep.mubr.f32.mxu0 0.0
    %668 = vmatmul.mubr.f32.gmra.mxu0 %v598
    %v669 = vpop.f32.mrf.mxu0
    %v670 = vadd.f32 %v595, %v669
    %v671 = vpop.f32.mrf.mxu0
    %672 = vmatprep.mubr.f32.mxu0 0.0
    %673 = vmatmul.mubr.f32.gmra.mxu0 %v601
    %v674 = vpop.f32.mrf.mxu0
    %v675 = vadd.f32 %v595, %v674
    %v676 = vpop.f32.mrf.mxu0
    %677 = vdwg.mxu0
    %vm678 = vcmp.gt.f32.partialorder %v670, 0.0
    %vm679 = vcmp.gt.f32.partialorder %v675, 0.0
    %v680 = vmul.f32 %v670, 1.442695
    %v681 = vpow.pop %v680
    %v682 = vmul.f32 %v675, 1.442695
    %v683 = vpow.pop %v682
    %v684 = vsub.f32 %v681, 1.0
    %v685 = vsub.f32 %v683, 1.0
    %v686 = vsel %vm678, %v670, %v684
    %v687 = vsel %vm679, %v675, %v685
    %v688 = vld [vmem:[%s7 + $0x1] sm:$0x1]
    %v689 = vld [vmem:[%s8 + $0x1] sm:$0x1]
    %v690 = vlaneseq
    %v691 = vshrl.u32 %v690, 7
    %v692 = vsub.s32 0, %v691
    %v693 = vrot.slane %v689, %v692
    %695 = vrot.lane.b32.xlu0 %v693, 8
    %v696 = vpop.permute.xlu0 %695
    %v698 = vmul.f32 %v449, %v696
    %v699 = vmul.f32 %v454, %v696
    %702 = vrot.lane.b32.xlu0 %v698, 120
    %v703 = vpop.permute.xlu0 %702
    %704 = vrot.lane.b32.xlu0 %v699, 120
    %v705 = vpop.permute.xlu0 %704
    %v708 = vsel %vm151, %v703, 0.0
    %709 = vadd.xlane.f32.xlu0 %v708
    %v710 = vpop.xlane.xlu0 %709
    %v711 = vsel %vm151, %v705, 0.0
    %712 = vadd.xlane.f32.xlu0 %v711
    %v713 = vpop.xlane.xlu0 %712
    %714 = vrot.lane.b32.xlu0 %v449, 120
    %v715 = vpop.permute.xlu0 %714
    %716 = vrot.lane.b32.xlu0 %v454, 120
    %v717 = vpop.permute.xlu0 %716
    %v719 = vsel %vm151, %v688, 0
    %v721 = vsel %vm151, %v715, 0
    %v723 = vsel %vm151, %v717, 0
    %725 = vmatprep.subr.mxu0 0.0
    %726 = vmatpush1.xpose.msra.mxu0 0.0
    %727 = vmatprep.subr.mxu0 0.0
    %728 = vmatpush1.xpose.msra.mxu0 0.0
    %729 = vmatprep.subr.mxu0 0.0
    %730 = vmatpush1.xpose.msra.mxu0 0.0
    %731 = vmatprep.subr.mxu0 0.0
    %732 = vmatpush1.xpose.msra.mxu0 0.0
    %733 = vmatprep.subr.mxu0 0.0
    %734 = vmatpush1.xpose.msra.mxu0 0.0
    %735 = vmatprep.subr.mxu0 0.0
    %736 = vmatpush1.xpose.msra.mxu0 0.0
    %737 = vmatprep.subr.mxu0 0.0
    %738 = vmatpush1.xpose.msra.mxu0 0.0
    %739 = vmatprep.subr.mxu0 0.0
    %740 = vmatpush1.xpose.msra.mxu0 0.0
    %741 = vmatprep.subr.mxu0 0.0
    %742 = vmatpush1.xpose.msra.mxu0 0.0
    %743 = vmatprep.subr.mxu0 0.0
    %744 = vmatpush1.xpose.msra.mxu0 0.0
    %745 = vmatprep.subr.mxu0 0.0
    %746 = vmatpush1.xpose.msra.mxu0 0.0
    %747 = vmatprep.subr.mxu0 0.0
    %748 = vmatpush1.xpose.msra.mxu0 0.0
    %749 = vmatprep.subr.mxu0 0.0
    %750 = vmatpush1.xpose.msra.mxu0 0.0
    %751 = vmatprep.subr.mxu0 0.0
    %752 = vmatpush1.xpose.msra.mxu0 0.0
    %753 = vmatprep.subr.mxu0 0.0
    %754 = vmatpush1.xpose.msra.mxu0 %v723
    %755 = vmatprep.subr.mxu0 0.0
    %756 = vmatpush1.xpose.msra.mxu0 %v721
    %757 = vmatprep.subr.mxu0 0.0
    %758 = vmatpush2.xpose.msra.mxu0 0.0
    %759 = vmatprep.subr.mxu0 0.0
    %760 = vmatpush2.xpose.msra.mxu0 0.0
    %761 = vmatprep.subr.mxu0 0.0
    %762 = vmatpush2.xpose.msra.mxu0 0.0
    %763 = vmatprep.subr.mxu0 0.0
    %764 = vmatpush2.xpose.msra.mxu0 0.0
    %765 = vmatprep.subr.mxu0 0.0
    %766 = vmatpush2.xpose.msra.mxu0 0.0
    %767 = vmatprep.subr.mxu0 0.0
    %768 = vmatpush2.xpose.msra.mxu0 0.0
    %769 = vmatprep.subr.mxu0 0.0
    %770 = vmatpush2.xpose.msra.mxu0 0.0
    %771 = vmatprep.subr.mxu0 0.0
    %772 = vmatpush2.xpose.msra.mxu0 0.0
    %773 = vmatprep.subr.mxu0 0.0
    %774 = vmatpush2.xpose.msra.mxu0 0.0
    %775 = vmatprep.subr.mxu0 0.0
    %776 = vmatpush2.xpose.msra.mxu0 0.0
    %777 = vmatprep.subr.mxu0 0.0
    %778 = vmatpush2.xpose.msra.mxu0 0.0
    %779 = vmatprep.subr.mxu0 0.0
    %780 = vmatpush2.xpose.msra.mxu0 0.0
    %781 = vmatprep.subr.mxu0 0.0
    %782 = vmatpush2.xpose.msra.mxu0 0.0
    %783 = vmatprep.subr.mxu0 0.0
    %784 = vmatpush2.xpose.msra.mxu0 0.0
    %785 = vmatprep.subr.mxu0 0.0
    %786 = vmatpush2.xpose.msra.mxu0 0.0
    %787 = vmatprep.subr.mxu0 0.0
    %788 = vmatpush2.xpose.msra.mxu0 0.0
    %789 = vmatprep.mubr.f32.mxu0 0.0
    %790 = vmatmul.mubr.f32.gmra.mxu0 %v719
    %v791 = vpop.f32.mrf.mxu0
    %v792 = vadd.f32 0.0, %v791
    %v793 = vpop.f32.mrf.mxu0
    %794 = vdwg.mxu0
    %v795 = vlaneseq
    %v796 = vshrl.u32 %v795, 7
    %v797 = vsub.s32 0, %v796
    %v798 = vrot.slane %v792, %v797
    %v799 = vadd.f32 %v710, %v798
    %v800 = vadd.f32 %v713, %v798
    %vm801 = vcmp.gt.f32.partialorder %v799, 0.0
    %vm802 = vcmp.gt.f32.partialorder %v800, 0.0
    %v803 = vmul.f32 %v799, 0.2
    %v804 = vmul.f32 %v800, 0.2
    %v805 = vsel %vm801, %v799, %v803
    %v806 = vsel %vm802, %v800, %v804
    %v807 = vadd.f32 %v805, %v49
    %v808 = vadd.f32 %v806, %v50
    %v809 = vsel %vm251, %v807, -inf
    %810 = vmax.xlane.f32.xlu0 %v809
    %v811 = vpop.xlane.xlu0 %810
    %v812 = vsel %vm251, %v808, -inf
    %813 = vmax.xlane.f32.xlu0 %v812
    %v814 = vpop.xlane.xlu0 %813
    %v815 = vsub.f32 %v807, %v811
    %v816 = vsub.f32 %v808, %v814
    %v817 = vmul.f32 %v815, 1.442695
    %v818 = vpow.pop %v817
    %v819 = vmul.f32 %v816, 1.442695
    %v820 = vpow.pop %v819
    %v821 = vmul.f32 %v818, %v45
    %v822 = vmul.f32 %v820, %v46
    %v823 = vsel %vm251, %v821, 0.0
    %824 = vadd.xlane.f32.xlu0 %v823
    %v825 = vpop.xlane.xlu0 %824
    %v826 = vsel %vm251, %v822, 0.0
    %827 = vadd.xlane.f32.xlu0 %v826
    %v828 = vpop.xlane.xlu0 %827
    %v829 = vmax.f32 %v825, 1e-09
    %v830 = vmax.f32 %v828, 1e-09
    %v831 = vrcp.pop %v829
    %v832 = vrcp.pop %v830
    %v833 = vmul.f32 %v821, %v831
    %v834 = vmul.f32 %v822, %v832
    %837 = vrot.lane.b32.xlu0 %v595, 120
    %v838 = vpop.permute.xlu0 %837
    %v841 = vsel %vm251, %v833, 0
    %v844 = vsel %vm251, %v834, 0
    %846 = vmatprep.subr.mxu0 0.0
    %847 = vmatpush1.msra.mxu0 0.0
    %848 = vmatprep.subr.mxu0 0.0
    %849 = vmatpush1.msra.mxu0 0.0
    %850 = vmatprep.subr.mxu0 0.0
    %851 = vmatpush1.msra.mxu0 0.0
    %852 = vmatprep.subr.mxu0 0.0
    %853 = vmatpush1.msra.mxu0 0.0
    %854 = vmatprep.subr.mxu0 0.0
    %855 = vmatpush1.msra.mxu0 0.0
    %856 = vmatprep.subr.mxu0 0.0
    %857 = vmatpush1.msra.mxu0 0.0
    %858 = vmatprep.subr.mxu0 0.0
    %859 = vmatpush1.msra.mxu0 0.0
    %860 = vmatprep.subr.mxu0 0.0
    %861 = vmatpush1.msra.mxu0 0.0
    %862 = vmatprep.subr.mxu0 0.0
    %863 = vmatpush1.msra.mxu0 0.0
    %864 = vmatprep.subr.mxu0 0.0
    %865 = vmatpush1.msra.mxu0 0.0
    %866 = vmatprep.subr.mxu0 0.0
    %867 = vmatpush1.msra.mxu0 0.0
    %868 = vmatprep.subr.mxu0 0.0
    %869 = vmatpush1.msra.mxu0 0.0
    %870 = vmatprep.subr.mxu0 0.0
    %871 = vmatpush1.msra.mxu0 0.0
    %872 = vmatprep.subr.mxu0 0.0
    %873 = vmatpush1.msra.mxu0 0.0
    %874 = vmatprep.subr.mxu0 0.0
    %875 = vmatpush1.msra.mxu0 %v717
    %876 = vmatprep.subr.mxu0 0.0
    %877 = vmatpush1.msra.mxu0 %v715
    %878 = vmatprep.subr.mxu0 0.0
    %879 = vmatpush2.msra.mxu0 0.0
    %880 = vmatprep.subr.mxu0 0.0
    %881 = vmatpush2.msra.mxu0 0.0
    %882 = vmatprep.subr.mxu0 0.0
    %883 = vmatpush2.msra.mxu0 0.0
    %884 = vmatprep.subr.mxu0 0.0
    %885 = vmatpush2.msra.mxu0 0.0
    %886 = vmatprep.subr.mxu0 0.0
    %887 = vmatpush2.msra.mxu0 0.0
    %888 = vmatprep.subr.mxu0 0.0
    %889 = vmatpush2.msra.mxu0 0.0
    %890 = vmatprep.subr.mxu0 0.0
    %891 = vmatpush2.msra.mxu0 0.0
    %892 = vmatprep.subr.mxu0 0.0
    %893 = vmatpush2.msra.mxu0 0.0
    %894 = vmatprep.subr.mxu0 0.0
    %895 = vmatpush2.msra.mxu0 0.0
    %896 = vmatprep.subr.mxu0 0.0
    %897 = vmatpush2.msra.mxu0 0.0
    %898 = vmatprep.subr.mxu0 0.0
    %899 = vmatpush2.msra.mxu0 0.0
    %900 = vmatprep.subr.mxu0 0.0
    %901 = vmatpush2.msra.mxu0 0.0
    %902 = vmatprep.subr.mxu0 0.0
    %903 = vmatpush2.msra.mxu0 0.0
    %904 = vmatprep.subr.mxu0 0.0
    %905 = vmatpush2.msra.mxu0 0.0
    %906 = vmatprep.subr.mxu0 0.0
    %907 = vmatpush2.msra.mxu0 0.0
    %908 = vmatprep.subr.mxu0 0.0
    %909 = vmatpush2.msra.mxu0 0.0
    %910 = vmatprep.mubr.f32.mxu0 0.0
    %911 = vmatmul.mubr.f32.gmra.mxu0 %v841
    %v912 = vpop.f32.mrf.mxu0
    %v913 = vadd.f32 %v838, %v912
    %v914 = vpop.f32.mrf.mxu0
    %915 = vmatprep.mubr.f32.mxu0 0.0
    %916 = vmatmul.mubr.f32.gmra.mxu0 %v844
    %v917 = vpop.f32.mrf.mxu0
    %v918 = vadd.f32 %v838, %v917
    %v919 = vpop.f32.mrf.mxu0
    %920 = vdwg.mxu0
    %vm921 = vcmp.gt.f32.partialorder %v913, 0.0
    %vm922 = vcmp.gt.f32.partialorder %v918, 0.0
    %v923 = vmul.f32 %v913, 1.442695
    %v924 = vpow.pop %v923
    %v925 = vmul.f32 %v918, 1.442695
    %v926 = vpow.pop %v925
    %v927 = vsub.f32 %v924, 1.0
    %v928 = vsub.f32 %v926, 1.0
    %v929 = vsel %vm921, %v913, %v927
    %v930 = vsel %vm922, %v918, %v928
    %933 = vrot.lane.b32.xlu0 %v929, 8
    %v934 = vpop.permute.xlu0 %933
    %935 = vrot.lane.b32.xlu0 %v930, 8
    %v936 = vpop.permute.xlu0 %935
    %v939 = vsel %vm151, %v686, %v934
    %v940 = vsel %vm151, %v687, %v936
    %941 = vst.msk [vmem:[#allocation4] sm:$0xff] %vm251, %v939
    %942 = vst.msk [vmem:[#allocation4 + $0x8] sm:$0xff] %vm251, %v940
    %v943 = vsel %vm251, %v939, 0.0
    %v944 = vsel %vm251, %v940, 0.0
    %v945 = vadd.f32 %v943, %v944
    %v946 = vrot.slane %v945, 4
    %v947 = vadd.f32 %v945, %v946
    %v948 = vrot.slane %v947, 2
    %v949 = vadd.f32 %v947, %v948
    %v950 = vrot.slane %v949, 1
    %v951 = vadd.f32 %v949, %v950
    %v952 = vmul.f32 %v951, 0.0625
    %v953 = vld [vmem:[%s10] sm:$0xff]
    %v954 = vld [vmem:[%s10 + $0x8] sm:$0xff]
    %v955 = vld [vmem:[%s11] sm:$0x1]
    %v957 = vsel %vm251, %v952, 0
    %959 = vmatprep.subr.mxu0 0.0
    %960 = vmatpush1.msra.mxu0 0.0
    %961 = vmatprep.subr.mxu0 0.0
    %962 = vmatpush1.msra.mxu0 0.0
    %963 = vmatprep.subr.mxu0 0.0
    %964 = vmatpush1.msra.mxu0 0.0
    %965 = vmatprep.subr.mxu0 0.0
    %966 = vmatpush1.msra.mxu0 0.0
    %967 = vmatprep.subr.mxu0 0.0
    %968 = vmatpush1.msra.mxu0 0.0
    %969 = vmatprep.subr.mxu0 0.0
    %970 = vmatpush1.msra.mxu0 0.0
    %971 = vmatprep.subr.mxu0 0.0
    %972 = vmatpush1.msra.mxu0 0.0
    %973 = vmatprep.subr.mxu0 0.0
    %974 = vmatpush1.msra.mxu0 0.0
    %975 = vmatprep.subr.mxu0 0.0
    %976 = vmatpush1.msra.mxu0 0.0
    %977 = vmatprep.subr.mxu0 0.0
    %978 = vmatpush1.msra.mxu0 0.0
    %979 = vmatprep.subr.mxu0 0.0
    %980 = vmatpush1.msra.mxu0 0.0
    %981 = vmatprep.subr.mxu0 0.0
    %982 = vmatpush1.msra.mxu0 0.0
    %983 = vmatprep.subr.mxu0 0.0
    %984 = vmatpush1.msra.mxu0 0.0
    %985 = vmatprep.subr.mxu0 0.0
    %986 = vmatpush1.msra.mxu0 0.0
    %987 = vmatprep.subr.mxu0 0.0
    %988 = vmatpush1.msra.mxu0 %v954
    %989 = vmatprep.subr.mxu0 0.0
    %990 = vmatpush1.msra.mxu0 %v953
    %991 = vmatprep.subr.mxu0 0.0
    %992 = vmatpush2.msra.mxu0 0.0
    %993 = vmatprep.subr.mxu0 0.0
    %994 = vmatpush2.msra.mxu0 0.0
    %995 = vmatprep.subr.mxu0 0.0
    %996 = vmatpush2.msra.mxu0 0.0
    %997 = vmatprep.subr.mxu0 0.0
    %998 = vmatpush2.msra.mxu0 0.0
    %999 = vmatprep.subr.mxu0 0.0
    %1000 = vmatpush2.msra.mxu0 0.0
    %1001 = vmatprep.subr.mxu0 0.0
    %1002 = vmatpush2.msra.mxu0 0.0
    %1003 = vmatprep.subr.mxu0 0.0
    %1004 = vmatpush2.msra.mxu0 0.0
    %1005 = vmatprep.subr.mxu0 0.0
    %1006 = vmatpush2.msra.mxu0 0.0
    %1007 = vmatprep.subr.mxu0 0.0
    %1008 = vmatpush2.msra.mxu0 0.0
    %1009 = vmatprep.subr.mxu0 0.0
    %1010 = vmatpush2.msra.mxu0 0.0
    %1011 = vmatprep.subr.mxu0 0.0
    %1012 = vmatpush2.msra.mxu0 0.0
    %1013 = vmatprep.subr.mxu0 0.0
    %1014 = vmatpush2.msra.mxu0 0.0
    %1015 = vmatprep.subr.mxu0 0.0
    %1016 = vmatpush2.msra.mxu0 0.0
    %1017 = vmatprep.subr.mxu0 0.0
    %1018 = vmatpush2.msra.mxu0 0.0
    %1019 = vmatprep.subr.mxu0 0.0
    %1020 = vmatpush2.msra.mxu0 0.0
    %1021 = vmatprep.subr.mxu0 0.0
    %1022 = vmatpush2.msra.mxu0 0.0
    %1023 = vmatprep.mubr.f32.mxu0 0.0
    %1024 = vmatmul.mubr.f32.gmra.mxu0 %v957
    %v1025 = vpop.f32.mrf.mxu0
    %v1026 = vadd.f32 %v955, %v1025
    %v1027 = vpop.f32.mrf.mxu0
    %1028 = vdwg.mxu0
    %vm1029 = vcmask 16384
    %1030 = vst.msk [vmem:[#allocation2] sm:$0x1] %vm1029, %v1026
    // Predicated region
    $region50: #{gat_forward.1} parent=1 // pred_check
      _
    $region51: #{gat_forward.1} parent=1 // pred_check_branch
      %1032 = sbr.rel (0) target = $region53
    $region52: #{gat_forward.1} parent=1 // pred_region
      %s1034 = ssub.s32 16, 16
      %1035 = vsyncadd [#allocation3], %s1034
      %s1037 = sshll.u32 [#allocation2], 4
      %s1038 = int_to_ptr.vmem [resolvable:$true] %s1037
      %1040 = dma.vmem_to_hbm [thread:$0]  %s1038, 16, %s12, [#allocation3]
    $region53: #{gat_forward.1} parent=1 // pred_fallthru
      _
    // Predicated region
    $region54: #{gat_forward.1} parent=1 // pred_check
      _
    $region55: #{gat_forward.1} parent=1 // pred_check_branch
      %1042 = sbr.rel (0) target = $region57
    $region56: #{gat_forward.1} parent=1 // pred_region
      %s1044 = ssub.s32 256, 256
      %1045 = vsyncadd [#allocation5], %s1044
      %s1046 = sshll.u32 [#allocation4], 4
      %s1047 = int_to_ptr.vmem [resolvable:$true] %s1046
      %1052 = dma.vmem_to_hbm [thread:$0]  %s1047, 256, %s13, [#allocation5], 128, 128, 8
    $region57: #{gat_forward.1} parent=1 // pred_fallthru
      _
    // Predicated region
    $region58: #{gat_forward.1} parent=1 // pred_check
      _
    $region59: #{gat_forward.1} parent=1 // pred_check_branch
      %1054 = sbr.rel (0) target = $region61
    $region60: #{gat_forward.1} parent=1 // pred_region
      %1055 = dma.done [#allocation3], 16
    $region61: #{gat_forward.1} parent=1 // pred_fallthru
      _
    // Predicated region
    $region62: #{gat_forward.1} parent=1 // pred_check
      _
    $region63: #{gat_forward.1} parent=1 // pred_check_branch
      %1057 = sbr.rel (0) target = $region65
    $region64: #{gat_forward.1} parent=1 // pred_region
      %1058 = dma.done [#allocation5], 256
    $region65: #{gat_forward.1} parent=1 // pred_fallthru
      _
    %1059 = vsyncpa [#allocation3], 1
    %1060 = vsyncpa [#allocation5], 1

</llo_original>
